<compile_context>
chip_gen: v7x
topology: tpu7x:2x2x1
jax: 0.10.0
libtpu: 0.0.40
codegen_flags: <defaults>
</compile_context>

<pallas_src>
import math
from functools import partial

import jax
import jax.numpy as jnp
from jax.experimental import pallas as pl
from jax.experimental.pallas import tpu as pltpu

# ---- PIVEN hyper-parameters (module __init__ defaults) ----------------------
LAMBDA_ = 15.0
SOFT = 160.0
ALPHA = 0.05
BETA = 0.5
EPS = 1e-6

_LANES = 128
_SUBLANES = 8
_NCHAN = 4          # packed channels: [U, L, v, y]
_NCORES = 2         # split the stream across both TensorCores (v7x); free elsewhere


def _round_up(x: int, m: int) -> int:
    return -(-x // m) * m


def _piven_partials_kernel(x_ref, o_ref, *, tile_r, soft):
    """x_ref: (tile_r, 512) block; lanes [c*128:(c+1)*128] hold channel c of
    [U, L, v, y].

    o_ref: (1, 4, 8, 128) per-core running partial sums (resident across the
    'arbitrary' grid axis):
        [0]=sum |U-L|*k_hard   [1]=sum k_hard   [2]=sum k_soft   [3]=sum sqerr
    """
    i = pl.program_id(1)

    @pl.when(i == 0)
    def _init():
        o_ref[...] = jnp.zeros_like(o_ref)

    groups = tile_r // _SUBLANES

    def body(g, carry):
        a_w, a_kh, a_ks, a_sq = carry
        r0 = pl.multiple_of(g * _SUBLANES, _SUBLANES)
        sl = pl.ds(r0, _SUBLANES)
        U = x_ref[sl, pl.ds(0 * _LANES, _LANES)]
        L = x_ref[sl, pl.ds(1 * _LANES, _LANES)]
        v = x_ref[sl, pl.ds(2 * _LANES, _LANES)]
        y = x_ref[sl, pl.ds(3 * _LANES, _LANES)]

        du = U - y
        dl = y - L
        # soft coverage indicator (EUP sigmoids)
        k_soft = jax.nn.sigmoid(soft * du) * jax.nn.sigmoid(soft * dl)
        # hard coverage indicator as a single compare+select
        k_hard = jnp.where(jnp.logical_and(du > 0.0, dl > 0.0), 1.0, 0.0)
        # |U - L| * k_hard == (du + dl) * k_hard wherever k_hard == 1
        width = (du + dl) * k_hard
        # point estimate v*U + (1-v)*L == L + v*(U-L)
        est = L + v * (U - L)
        sq = jnp.square(y - est)
        return (a_w + width, a_kh + k_hard, a_ks + k_soft, a_sq + sq)

    zero = jnp.zeros((_SUBLANES, _LANES), jnp.float32)
    a_w, a_kh, a_ks, a_sq = jax.lax.fori_loop(
        0, groups, body, (zero, zero, zero, zero), unroll=min(8, groups))

    o_ref[0, 0] += a_w
    o_ref[0, 1] += a_kh
    o_ref[0, 2] += a_ks
    o_ref[0, 3] += a_sq


def piven_loss(outputs: jax.Array, targets: jax.Array, *,
               tile_rows: int = 2048) -> jax.Array:
    """outputs: (N, >=3) f32   targets: (N, 1) f32   ->   scalar f32 loss."""
    n = outputs.shape[0]
    outputs = outputs.astype(jnp.float32)
    targets = targets.astype(jnp.float32)

    # ---- balanced lane-dense tiling -----------------------------------------
    rows_needed = max(_SUBLANES, _round_up(pl.cdiv(n, _LANES), _SUBLANES))
    tiles = _NCORES * pl.cdiv(pl.cdiv(rows_needed, tile_rows), _NCORES)
    tile_r = _round_up(pl.cdiv(rows_needed, tiles), _SUBLANES)
    rows = tiles * tile_r
    steps = tiles // _NCORES
    n_pad = rows * _LANES

    # ---- lane-packed (rows, 512) slab with sentinel padding -----------------
    # Sentinels U=0, L=1, v=1, y=0  ->  k_soft=0, k_hard=0, width=0, sqerr=0,
    # so padded elements contribute nothing and need no in-kernel mask.
    chans = jnp.concatenate([outputs[:, :3], targets[:, :1]], axis=1)   # (n, 4)
    pad_row = jnp.array([[0.0, 1.0, 1.0, 0.0]], jnp.float32)
    chans = jnp.concatenate(
        [chans, jnp.broadcast_to(pad_row, (n_pad - n, _NCHAN))], axis=0)
    packed = (chans.reshape(rows, _LANES, _NCHAN)
              .transpose(0, 2, 1)
              .reshape(rows, _NCHAN * _LANES))

    kernel = partial(_piven_partials_kernel, tile_r=tile_r, soft=SOFT)

    partials = pl.pallas_call(
        kernel,
        out_shape=jax.ShapeDtypeStruct(
            (_NCORES, _NCHAN, _SUBLANES, _LANES), jnp.float32),
        grid=(_NCORES, steps),
        in_specs=[pl.BlockSpec((tile_r, _NCHAN * _LANES),
                               lambda c, i: (c * steps + i, 0))],
        out_specs=pl.BlockSpec((1, _NCHAN, _SUBLANES, _LANES),
                               lambda c, i: (c, 0, 0, 0)),
        compiler_params=pltpu.CompilerParams(
            dimension_semantics=("parallel", "arbitrary"),
            allow_input_fusion=[True],
            vmem_limit_bytes=32 * 1024 * 1024),
    )(packed)

    # ---- tiny scalar epilogue in the wrapper ---------------------------------
    s = jnp.sum(partials, axis=(0, 2, 3))          # (4,) [width, k_hard, k_soft, sqerr]
    s_width, s_khard, s_ksoft, s_sqerr = s[0], s[1], s[2], s[3]
    mpiw_capt = s_width / (s_khard + EPS)
    picp_soft = s_ksoft / n
    penalty = jnp.square(jnp.maximum(1.0 - ALPHA - picp_soft, 0.0))
    loss = mpiw_capt + math.sqrt(n) * LAMBDA_ * penalty
    regloss = s_sqerr / n
    return BETA * loss + (1.0 - BETA) * regloss


def _piven_reference(outputs, targets):
    """Pure-JAX reference of the same semantics (for a sanity check)."""
    n = outputs.shape[0]
    U, L, v = outputs[:, 0], outputs[:, 1], outputs[:, 2]
    y = targets[:, 0]
    k_soft = jax.nn.sigmoid(SOFT * (U - y)) * jax.nn.sigmoid(SOFT * (y - L))
    k_hard = jnp.maximum(jnp.sign(U - y), 0.0) * jnp.maximum(jnp.sign(y - L), 0.0)
    mpiw_capt = jnp.sum(jnp.abs(U - L) * k_hard) / (jnp.sum(k_hard) + EPS)
    picp_soft = jnp.mean(k_soft)
    penalty = jnp.square(jnp.maximum(1.0 - ALPHA - picp_soft, 0.0))
    loss = mpiw_capt + math.sqrt(n) * LAMBDA_ * penalty
    est = (v * U + (1.0 - v) * L).reshape(-1, 1)
    regloss = jnp.mean(jnp.square(targets - est))
    return BETA * loss + (1.0 - BETA) * regloss


if __name__ == "__main__":
    def make_inputs(key, n):
        k1, k2, k3, k4 = jax.random.split(key, 4)
        base = jax.random.normal(k1, (n,), jnp.float32)
        U = base + 0.5 + 0.1 * jax.random.normal(k2, (n,))
        L = base - 0.5 + 0.1 * jax.random.normal(k3, (n,))
        v = jax.nn.sigmoid(jax.random.normal(k4, (n,)))
        outputs = jnp.stack([U, L, v], axis=1).astype(jnp.float32)
        targets = (base + 0.05 * jax.random.normal(k2, (n,))).reshape(n, 1)
        return outputs, targets.astype(jnp.float32)

    key = jax.random.PRNGKey(0)
    ka, kb = jax.random.split(key)

    # Small case: one step per core, heavy sentinel padding exercised.
    out_s, tgt_s = make_inputs(ka, 8)
    loss_s = piven_loss(out_s, tgt_s)
    jax.block_until_ready(loss_s)
    ref_s = _piven_reference(out_s, tgt_s)
    assert jnp.allclose(loss_s, ref_s, rtol=3e-4, atol=1e-5), (loss_s, ref_s)

    # Moderate case with a tiny row tile to exercise multi-step accumulation
    # on both cores of the (parallel, arbitrary) grid.
    out_m, tgt_m = make_inputs(kb, 2500)
    loss_m = piven_loss(out_m, tgt_m, tile_rows=8)
    jax.block_until_ready(loss_m)
    ref_m = _piven_reference(out_m, tgt_m)
    assert jnp.allclose(loss_m, ref_m, rtol=3e-4, atol=1e-5), (loss_m, ref_m)

    print("KERNEL_OK")
</pallas_src>

<mosaic_0001>
module attributes {stable_mosaic.version = 11 : i64} {
  func.func @_piven_partials_kernel(%arg0: i32, %arg1: i32, %arg2: memref<8x512xf32, #tpu.memory_space<vmem>>, %arg3: memref<1x4x8x128xf32, #tpu.memory_space<vmem>>) attributes {dimension_semantics = [#tpu.dimension_semantics<parallel>, #tpu.dimension_semantics<arbitrary>], iteration_bounds = array<i64: 2, 1>, scalar_prefetch = 0 : i64, scratch_operands = 0 : i64, tpu.core_type = #tpu.core_type<tc>, window_params = [{transform_indices = @transform_0, window_bounds = array<i64: 8, 512>}, {transform_indices = @transform_1, window_bounds = array<i64: 1, 4, 8, 128>}]} {
    %c0_i32 = arith.constant 0 : i32
    %0 = arith.cmpi eq, %arg1, %c0_i32 : i32
    %1 = arith.extui %0 : i1 to i32
    %c0_i32_0 = arith.constant 0 : i32
    %2 = arith.cmpi ne, %1, %c0_i32_0 : i32
    scf.if %2 {
      %cst_39 = arith.constant 0.000000e+00 : f32
      %74 = vector.broadcast %cst_39 : f32 to vector<1x4x8x128xf32>
      %c0_40 = arith.constant 0 : index
      %c0_41 = arith.constant 0 : index
      %c0_42 = arith.constant 0 : index
      %c0_43 = arith.constant 0 : index
      %75 = vector.load %arg3[%c0_40, %c0_41, %c0_42, %c0_43] : memref<1x4x8x128xf32, #tpu.memory_space<vmem>>, vector<1x4x8x128xf32>
      tpu.vector_store %arg3[%c0_40, %c0_41, %c0_42, %c0_43], %74 {strides = array<i32>} : memref<1x4x8x128xf32, #tpu.memory_space<vmem>>, vector<1x4x8x128xf32>,
    } else {
    }
    %cst = arith.constant 0.000000e+00 : f32
    %3 = vector.broadcast %cst : f32 to vector<8x128xf32>
    %c0_i32_1 = arith.constant 0 : i32
    %c8_i32 = arith.constant 8 : i32
    %4 = arith.muli %c0_i32_1, %c8_i32 : i32
    %5 = tpu.assume_multiple %4, 8 : i32
    %6 = arith.index_cast %5 : i32 to index
    %c0 = arith.constant 0 : index
    %7 = vector.load %arg2[%6, %c0] : memref<8x512xf32, #tpu.memory_space<vmem>>, vector<8x128xf32>
    %8 = arith.index_cast %5 : i32 to index
    %c128 = arith.constant 128 : index
    %9 = vector.load %arg2[%8, %c128] : memref<8x512xf32, #tpu.memory_space<vmem>>, vector<8x128xf32>
    %10 = arith.index_cast %5 : i32 to index
    %c256 = arith.constant 256 : index
    %11 = vector.load %arg2[%10, %c256] : memref<8x512xf32, #tpu.memory_space<vmem>>, vector<8x128xf32>
    %12 = arith.index_cast %5 : i32 to index
    %c384 = arith.constant 384 : index
    %13 = vector.load %arg2[%12, %c384] : memref<8x512xf32, #tpu.memory_space<vmem>>, vector<8x128xf32>
    %14 = arith.subf %7, %13 : vector<8x128xf32>
    %15 = arith.subf %13, %9 : vector<8x128xf32>
    %cst_2 = arith.constant 1.600000e+02 : f32
    %16 = vector.broadcast %cst_2 : f32 to vector<8x128xf32>
    %17 = arith.mulf %16, %14 : vector<8x128xf32>
    %18 = arith.negf %17 : vector<8x128xf32>
    %19 = math.exp %18 : vector<8x128xf32>
    %cst_3 = arith.constant 1.000000e+00 : f32
    %20 = vector.broadcast %cst_3 : f32 to vector<8x128xf32>
    %21 = arith.addf %20, %19 : vector<8x128xf32>
    %22 = arith.divf %20, %21 : vector<8x128xf32>
    %cst_4 = arith.constant 1.600000e+02 : f32
    %23 = vector.broadcast %cst_4 : f32 to vector<8x128xf32>
    %24 = arith.mulf %23, %15 : vector<8x128xf32>
    %25 = arith.negf %24 : vector<8x128xf32>
    %26 = math.exp %25 : vector<8x128xf32>
    %cst_5 = arith.constant 1.000000e+00 : f32
    %27 = vector.broadcast %cst_5 : f32 to vector<8x128xf32>
    %28 = arith.addf %27, %26 : vector<8x128xf32>
    %29 = arith.divf %27, %28 : vector<8x128xf32>
    %30 = arith.mulf %22, %29 : vector<8x128xf32>
    %cst_6 = arith.constant 0.000000e+00 : f32
    %31 = vector.broadcast %cst_6 : f32 to vector<8x128xf32>
    %32 = arith.cmpf ogt, %14, %31 : vector<8x128xf32>
    %cst_7 = arith.constant 0.000000e+00 : f32
    %33 = vector.broadcast %cst_7 : f32 to vector<8x128xf32>
    %34 = arith.cmpf ogt, %15, %33 : vector<8x128xf32>
    %35 = arith.andi %32, %34 : vector<8x128xi1>
    %cst_8 = arith.constant 1.000000e+00 : f32
    %cst_9 = arith.constant 0.000000e+00 : f32
    %36 = vector.broadcast %cst_8 : f32 to vector<8x128xf32>
    %37 = vector.broadcast %cst_9 : f32 to vector<8x128xf32>
    %38 = arith.select %35, %36, %37 : vector<8x128xi1>, vector<8x128xf32>
    %39 = arith.addf %14, %15 : vector<8x128xf32>
    %40 = arith.mulf %39, %38 : vector<8x128xf32>
    %41 = arith.subf %7, %9 : vector<8x128xf32>
    %42 = arith.mulf %11, %41 : vector<8x128xf32>
    %43 = arith.addf %9, %42 : vector<8x128xf32>
    %44 = arith.subf %13, %43 : vector<8x128xf32>
    %45 = arith.mulf %44, %44 : vector<8x128xf32>
    %46 = arith.addf %3, %40 : vector<8x128xf32>
    %47 = arith.addf %3, %38 : vector<8x128xf32>
    %48 = arith.addf %3, %30 : vector<8x128xf32>
    %49 = arith.addf %3, %45 : vector<8x128xf32>
    %c1_i32 = arith.constant 1 : i32
    %c0_10 = arith.constant 0 : index
    %c0_11 = arith.constant 0 : index
    %c0_12 = arith.constant 0 : index
    %c0_13 = arith.constant 0 : index
    %50 = vector.load %arg3[%c0_10, %c0_11, %c0_12, %c0_13] : memref<1x4x8x128xf32, #tpu.memory_space<vmem>>, vector<1x1x8x128xf32>
    %51 = vector.shape_cast %50 : vector<1x1x8x128xf32> to vector<8x128xf32>
    %52 = arith.addf %51, %46 : vector<8x128xf32>
    %c0_14 = arith.constant 0 : index
    %c0_15 = arith.constant 0 : index
    %c0_16 = arith.constant 0 : index
    %c0_17 = arith.constant 0 : index
    %53 = vector.load %arg3[%c0_14, %c0_15, %c0_16, %c0_17] : memref<1x4x8x128xf32, #tpu.memory_space<vmem>>, vector<1x1x8x128xf32>
    %54 = vector.shape_cast %53 : vector<1x1x8x128xf32> to vector<8x128xf32>
    %55 = vector.shape_cast %52 : vector<8x128xf32> to vector<1x1x8x128xf32>
    tpu.vector_store %arg3[%c0_14, %c0_15, %c0_16, %c0_17], %55 {strides = array<i32>} : memref<1x4x8x128xf32, #tpu.memory_space<vmem>>, vector<1x1x8x128xf32>,
    %c0_18 = arith.constant 0 : index
    %c1 = arith.constant 1 : index
    %c0_19 = arith.constant 0 : index
    %c0_20 = arith.constant 0 : index
    %56 = vector.load %arg3[%c0_18, %c1, %c0_19, %c0_20] : memref<1x4x8x128xf32, #tpu.memory_space<vmem>>, vector<1x1x8x128xf32>
    %57 = vector.shape_cast %56 : vector<1x1x8x128xf32> to vector<8x128xf32>
    %58 = arith.addf %57, %47 : vector<8x128xf32>
    %c0_21 = arith.constant 0 : index
    %c1_22 = arith.constant 1 : index
    %c0_23 = arith.constant 0 : index
    %c0_24 = arith.constant 0 : index
    %59 = vector.load %arg3[%c0_21, %c1_22, %c0_23, %c0_24] : memref<1x4x8x128xf32, #tpu.memory_space<vmem>>, vector<1x1x8x128xf32>
    %60 = vector.shape_cast %59 : vector<1x1x8x128xf32> to vector<8x128xf32>
    %61 = vector.shape_cast %58 : vector<8x128xf32> to vector<1x1x8x128xf32>
    tpu.vector_store %arg3[%c0_21, %c1_22, %c0_23, %c0_24], %61 {strides = array<i32>} : memref<1x4x8x128xf32, #tpu.memory_space<vmem>>, vector<1x1x8x128xf32>,
    %c0_25 = arith.constant 0 : index
    %c2 = arith.constant 2 : index
    %c0_26 = arith.constant 0 : index
    %c0_27 = arith.constant 0 : index
    %62 = vector.load %arg3[%c0_25, %c2, %c0_26, %c0_27] : memref<1x4x8x128xf32, #tpu.memory_space<vmem>>, vector<1x1x8x128xf32>
    %63 = vector.shape_cast %62 : vector<1x1x8x128xf32> to vector<8x128xf32>
    %64 = arith.addf %63, %48 : vector<8x128xf32>
    %c0_28 = arith.constant 0 : index
    %c2_29 = arith.constant 2 : index
    %c0_30 = arith.constant 0 : index
    %c0_31 = arith.constant 0 : index
    %65 = vector.load %arg3[%c0_28, %c2_29, %c0_30, %c0_31] : memref<1x4x8x128xf32, #tpu.memory_space<vmem>>, vector<1x1x8x128xf32>
    %66 = vector.shape_cast %65 : vector<1x1x8x128xf32> to vector<8x128xf32>
    %67 = vector.shape_cast %64 : vector<8x128xf32> to vector<1x1x8x128xf32>
    tpu.vector_store %arg3[%c0_28, %c2_29, %c0_30, %c0_31], %67 {strides = array<i32>} : memref<1x4x8x128xf32, #tpu.memory_space<vmem>>, vector<1x1x8x128xf32>,
    %c0_32 = arith.constant 0 : index
    %c3 = arith.constant 3 : index
    %c0_33 = arith.constant 0 : index
    %c0_34 = arith.constant 0 : index
    %68 = vector.load %arg3[%c0_32, %c3, %c0_33, %c0_34] : memref<1x4x8x128xf32, #tpu.memory_space<vmem>>, vector<1x1x8x128xf32>
    %69 = vector.shape_cast %68 : vector<1x1x8x128xf32> to vector<8x128xf32>
    %70 = arith.addf %69, %49 : vector<8x128xf32>
    %c0_35 = arith.constant 0 : index
    %c3_36 = arith.constant 3 : index
    %c0_37 = arith.constant 0 : index
    %c0_38 = arith.constant 0 : index
    %71 = vector.load %arg3[%c0_35, %c3_36, %c0_37, %c0_38] : memref<1x4x8x128xf32, #tpu.memory_space<vmem>>, vector<1x1x8x128xf32>
    %72 = vector.shape_cast %71 : vector<1x1x8x128xf32> to vector<8x128xf32>
    %73 = vector.shape_cast %70 : vector<8x128xf32> to vector<1x1x8x128xf32>
    tpu.vector_store %arg3[%c0_35, %c3_36, %c0_37, %c0_38], %73 {strides = array<i32>} : memref<1x4x8x128xf32, #tpu.memory_space<vmem>>, vector<1x1x8x128xf32>,
    return
  }
  func.func @transform_0(%arg0: i32, %arg1: i32) -> (i32, i32) {
    %c1_i32 = arith.constant 1 : i32
    %0 = arith.muli %arg0, %c1_i32 : i32
    %1 = arith.addi %0, %arg1 : i32
    %c0_i32 = arith.constant 0 : i32
    %c0_i32_0 = arith.constant 0 : i32
    return %1, %c0_i32 : i32, i32
  }
  func.func @transform_1(%arg0: i32, %arg1: i32) -> (i32, i32, i32, i32) {
    %c0_i32 = arith.constant 0 : i32
    %c0_i32_0 = arith.constant 0 : i32
    %c0_i32_1 = arith.constant 0 : i32
    %c0_i32_2 = arith.constant 0 : i32
    return %arg0, %c0_i32, %c0_i32_0, %c0_i32_1 : i32, i32, i32, i32
  }
}

</mosaic_0001>

<llo_original>
// kernel: tpu_custom_call.1
$region0: #{tpu_custom_call.1}
  #allocation0 [shape = 'u32[]', space=smem, size = 0x4, offset = 0x4, fixed_abs, tag = 'smem constant byte address 0x4 - core index']
  #allocation1 [shape = 'u32[144,128]{1,0:T(1,128)}', space=vmem, size = 0x12000, scoped, tag = 'internal scratch']
  %s0 = inlined_call_operand.hbm [shape: f32[16,512], index: 0, kind: input, shape index: {}]
  %s1 = inlined_call_operand.hbm [shape: f32[2,4,8,128], index: 1, kind: output, shape index: {}]
  %s2 = sld [smem:[#allocation0]]
  $region45: #{tpu_custom_call.1} parent=0
    _
  %s4 = ssub.s32 1, %s2
  %s5 = scalar_select 0, %s4, %s2
  $region1: #{tpu_custom_call.1} parent=0
    #allocation2 [shape = 'u8[32768]{0}', space=vmem, size = 0x8000, scoped, tag = 'input window, operand 0']
    #allocation3 [shape = 's32[2]{0}', space=sflag, size = 0x8, scoped, tag = 'scoped memory for tpu_custom_call.1']
    #allocation4 [shape = 's32[2]{0}', space=sflag, size = 0x8, scoped, tag = 'scoped memory for tpu_custom_call.1']
    #allocation5 [shape = 'u8[32768]{0}', space=vmem, size = 0x8000, scoped, tag = 'output window, operand 0']
    %6 = vsyncpa [#allocation3], 0
    %s7 = scalar_lea.sflag [#allocation3], 1
    %8 = vsyncpa %s7, 0
    %9 = vsyncpa [#allocation4], 0
    %s10 = scalar_lea.sflag [#allocation4], 1
    %11 = vsyncpa %s10, 0
    loop: start=0, step=1, limit=4
    $region2: #{tpu_custom_call.1} parent=1 // loop_pre_header
      _
    $region3: #{tpu_custom_call.1} parent=1 // loop_header
      %s13 = sphi 0, %s17
      %p14 = scmp.ge.s32.totalorder %s13, 4
      %s20 = sphi 0, %s32
      %s21 = sphi 0, %s28
      %s22 = sphi 0, %s20
      %s23 = sphi 0, %s21
      %s24 = sphi 0, %s22
      %s25 = sphi 0, %s23
      %s37 = sphi 0, %s39
      %s40 = sphi 0, %s37
      %s41 = sphi 0, %s40
      %s57 = sphi 0, %s41
      %s63 = sphi 0, %s65
      %s66 = sphi 0, %s63
      %s67 = sphi 0, %s66
      %s83 = sphi 0, %s67
    $region4: #{tpu_custom_call.1} parent=1 // loop_header_branch
      %16 = sbr.rel (%p14) target = $region8
    $region5: #{tpu_custom_call.1} parent=1 // loop_body
      %s18 = ssub.s32 %s13, 1
      %s19 = ssub.s32 %s13, 2
      %s26 = sadd.s32 1, %s21
      %p27 = scmp.ge.s32.totalorder %s26, 1
      %s28 = scalar_select %p27, 0, %s26
      %s29 = sadd.s32 1, %s20
      %s30 = scalar_select %p27, %s29, %s20
      %p31 = scmp.ge.s32.totalorder %s30, 2
      %s32 = scalar_select %p31, 0, %s30
      %s33 = sadd.s32 %s20, %s21
      %s34 = sadd.s32 %s32, %s28
      %s35 = ssub.s32 %s33, %s34
      %p36 = scmp.eq.s32.totalorder %s35, 0
      %s38 = sadd.s32 %s37, 1
      %s39 = scalar_select %p36, %s37, %s38
      %p42 = pneg %p36
      %p43 = scmp.eq.s32.totalorder %s13, 1
      %p44 = por %p42, %p43
      %p45 = scmp.ne.s32.totalorder %s37, %s40
      %p46 = scmp.eq.s32.totalorder %s13, 0
      %p47 = por %p45, %p46
      %p48 = scmp.ne.s32.totalorder %s37, %s40
      %p49 = scmp.eq.s32.totalorder %s18, 1
      %p50 = por %p48, %p49
      %p51 = scmp.ne.s32.totalorder %s40, %s41
      %p52 = scmp.eq.s32.totalorder %s18, 0
      %p53 = por %p51, %p52
      %p54 = scmp.ne.s32.totalorder %s40, %s41
      %p55 = scmp.eq.s32.totalorder %s19, 1
      %p56 = por %p54, %p55
      %p58 = scmp.ne.s32.totalorder %s41, %s57
      %p59 = scmp.eq.s32.totalorder %s19, 0
      %p60 = por %p58, %p59
      %s61 = ssub.s32 %s20, %s32
      %p62 = scmp.eq.s32.totalorder %s61, 0
      %s64 = sadd.s32 %s63, 1
      %s65 = scalar_select %p62, %s63, %s64
      %p68 = pneg %p62
      %p69 = scmp.eq.s32.totalorder %s13, 1
      %p70 = por %p68, %p69
      %p71 = scmp.ne.s32.totalorder %s63, %s66
      %p72 = scmp.eq.s32.totalorder %s13, 0
      %p73 = por %p71, %p72
      %p74 = scmp.ne.s32.totalorder %s63, %s66
      %p75 = scmp.eq.s32.totalorder %s18, 1
      %p76 = por %p74, %p75
      %p77 = scmp.ne.s32.totalorder %s66, %s67
      %p78 = scmp.eq.s32.totalorder %s18, 0
      %p79 = por %p77, %p78
      %p80 = scmp.ne.s32.totalorder %s66, %s67
      %p81 = scmp.eq.s32.totalorder %s19, 1
      %p82 = por %p80, %p81
      %p84 = scmp.ne.s32.totalorder %s67, %s83
      %p85 = scmp.eq.s32.totalorder %s19, 0
      %p86 = por %p84, %p85
      %p87 = scmp.le.s32.totalorder 1, %s13
      %p88 = scmp.lt.s32.totalorder %s13, 3
      %p89 = pnand %p87, %p88
      %p90 = pneg %p89
      // Predicated region
      $region9: #{tpu_custom_call.1} parent=5 // pred_check
        _
      $region10: #{tpu_custom_call.1} parent=5 // pred_check_branch
        %92 = sbr.rel (%p89) target = $region12
      $region11: #{tpu_custom_call.1} parent=5 // pred_region
        %s93 = ssub.s32 %s13, 1
      $region12: #{tpu_custom_call.1} parent=5 // pred_fallthru
        _
      %p94 = scmp.lt.s32.totalorder %s13, 2
      // Predicated region
      $region13: #{tpu_custom_call.1} parent=5 // pred_check
        %p95 = pneg %p94
      $region14: #{tpu_custom_call.1} parent=5 // pred_check_branch
        %97 = sbr.rel (%p95) target = $region16
      $region15: #{tpu_custom_call.1} parent=5 // pred_region
        // Predicated region
        $region17: #{tpu_custom_call.1} parent=15 // pred_check
          %p98 = pneg %p47
        $region18: #{tpu_custom_call.1} parent=15 // pred_check_branch
          %100 = sbr.rel (%p98) target = $region20
        $region19: #{tpu_custom_call.1} parent=15 // pred_region
          %s101 = sand.u32 %s37, 1
          %s102 = scalar_lea.sflag [#allocation3], %s101
          %s103 = sand.u32 %s37, 1
          %s104 = smul.addr %s103, 32
          %s105 = scalar_lea.vmem [#allocation2], %s104
          %s106 = sadd.s32 %s20, %s21
          %s108 = ssub.s32 512, 512
          %109 = vsyncadd %s102, %s108
          %s110 = smul.addr %s106, 4
          %s111 = smul.addr %s110, 128
          %s112 = scalar_lea.hbm %s0, %s111
          %s114 = sshll.u32 %s105, 4
          %s115 = int_to_ptr.vmem [resolvable:$true] %s114
          %117 = dma.hbm_to_vmem [thread:$0]  %s112, 512, %s115, %s102
        $region20: #{tpu_custom_call.1} parent=15 // pred_fallthru
          _
      $region16: #{tpu_custom_call.1} parent=5 // pred_fallthru
        _
      %p118 = scmp.le.s32.totalorder 1, %s13
      %p119 = scmp.lt.s32.totalorder %s13, 3
      %p120 = pnand %p118, %p119
      %p121 = pneg %p120
      // Predicated region
      $region21: #{tpu_custom_call.1} parent=5 // pred_check
        _
      $region22: #{tpu_custom_call.1} parent=5 // pred_check_branch
        %123 = sbr.rel (%p120) target = $region24
      $region23: #{tpu_custom_call.1} parent=5 // pred_region
        %s124 = ssub.s32 %s13, 1
        %s125 = sand.u32 %s40, 1
        %s126 = scalar_lea.sflag [#allocation3], %s125
        %s127 = sand.u32 %s40, 1
        %s128 = smul.addr %s127, 32
        %s129 = scalar_lea.vmem [#allocation2], %s128
        // Predicated region
        $region25: #{tpu_custom_call.1} parent=23 // pred_check
          %p130 = pneg %p53
        $region26: #{tpu_custom_call.1} parent=23 // pred_check_branch
          %132 = sbr.rel (%p130) target = $region28
        $region27: #{tpu_custom_call.1} parent=23 // pred_region
          %133 = dma.done %s126, 512
        $region28: #{tpu_custom_call.1} parent=23 // pred_fallthru
          _
        %s134 = sand.u32 %s40, 1
        %s135 = scalar_lea.sflag [#allocation3], %s134
        %s136 = sand.u32 %s40, 1
        %s137 = smul.addr %s136, 32
        %s138 = scalar_lea.vmem [#allocation2], %s137
        %p139 = pneg %p53
        %p140 = pneg %p50
        %p141 = pneg %p79
        %p142 = pneg %p76
        %s143 = sand.u32 %s66, 1
        %s144 = scalar_lea.sflag [#allocation4], %s143
        %s145 = sand.u32 %s66, 1
        %s146 = smul.addr %s145, 32
        %s147 = scalar_lea.vmem [#allocation5], %s146
        %s148 = sadd.s32 %s22, %s23
        %p149 = scmp.eq.s32.totalorder %s23, 0
        // Predicated region
        $region29: #{tpu_custom_call.1} parent=23 // pred_check
          %p150 = pneg %p149
        $region30: #{tpu_custom_call.1} parent=23 // pred_check_branch
          %152 = sbr.rel (%p150) target = $region32
        $region31: #{tpu_custom_call.1} parent=23 // pred_region
          %153 = vst [vmem:[%s147] sm:$0xff] 0.0
          %154 = vst [vmem:[%s147 + $0x8] sm:$0xff] 0.0
          %155 = vst [vmem:[%s147 + $0x10] sm:$0xff] 0.0
          %156 = vst [vmem:[%s147 + $0x18] sm:$0xff] 0.0
        $region32: #{tpu_custom_call.1} parent=23 // pred_fallthru
          _
        %s157 = smul.u32 0, 4
        %s158 = smul.addr %s157, 8
        %s159 = scalar_lea.vmem %s129, %s158 [#allocation2]
        %v160 = vld [vmem:[%s159] sm:$0xff]
        %v161 = vld [vmem:[%s159 + $0x8] sm:$0xff]
        %v162 = vld [vmem:[%s159 + $0x10] sm:$0xff]
        %v163 = vld [vmem:[%s159 + $0x18] sm:$0xff]
        %v164 = vsub.f32 %v160, %v163
        %v165 = vsub.f32 %v163, %v161
        %v166 = vmul.f32 %v164, 160.0
        %v167 = vxor.u32 %v166, 2147483648
        %v168 = vmul.f32 %v167, 1.442695
        %v169 = vpow.pop %v168
        %v170 = vadd.f32 %v169, 1.0
        %v171 = vrcp.pop %v170
        %v172 = vmul.f32 1.0, %v171
        %v173 = vmul.f32 %v165, 160.0
        %v174 = vxor.u32 %v173, 2147483648
        %v175 = vmul.f32 %v174, 1.442695
        %v176 = vpow.pop %v175
        %v177 = vadd.f32 %v176, 1.0
        %v178 = vrcp.pop %v177
        %v179 = vmul.f32 1.0, %v178
        %v180 = vmul.f32 %v172, %v179
        %vm181 = vcmp.gt.f32.partialorder %v164, 0.0
        %vm182 = vcmp.gt.f32.partialorder %v165, 0.0
        %vm183 = vmand %vm181, %vm182
        %v184 = vsel %vm183, 1.0, 0.0
        %v185 = vadd.f32 %v164, %v165
        %v186 = vmul.f32 %v185, %v184
        %v187 = vsub.f32 %v160, %v161
        %v188 = vmul.f32 %v162, %v187
        %v189 = vadd.f32 %v161, %v188
        %v190 = vsub.f32 %v163, %v189
        %v191 = vmul.f32 %v190, %v190
        %v192 = vadd.f32 %v186, 0.0
        %v193 = vadd.f32 %v184, 0.0
        %v194 = vadd.f32 %v180, 0.0
        %v195 = vadd.f32 %v191, 0.0
        %v196 = vld [vmem:[%s147] sm:$0xff]
        %v197 = vadd.f32 %v196, %v192
        %198 = vst [vmem:[%s147] sm:$0xff] %v197
        %s199 = scalar_lea.vmem %s147, 8 [#allocation5]
        %v200 = vld [vmem:[%s199] sm:$0xff]
        %v201 = vadd.f32 %v200, %v193
        %202 = vst [vmem:[%s199] sm:$0xff] %v201
        %s203 = scalar_lea.vmem %s147, 16 [#allocation5]
        %v204 = vld [vmem:[%s203] sm:$0xff]
        %v205 = vadd.f32 %v204, %v194
        %206 = vst [vmem:[%s203] sm:$0xff] %v205
        %s207 = scalar_lea.vmem %s147, 24 [#allocation5]
        %v208 = vld [vmem:[%s207] sm:$0xff]
        %v209 = vadd.f32 %v208, %v195
        %210 = vst [vmem:[%s207] sm:$0xff] %v209
        %s211 = sand.u32 %s66, 1
        %s212 = scalar_lea.sflag [#allocation4], %s211
        %s213 = sand.u32 %s66, 1
        %s214 = smul.addr %s213, 32
        %s215 = scalar_lea.vmem [#allocation5], %s214
        // Predicated region
        $region33: #{tpu_custom_call.1} parent=23 // pred_check
          %p216 = pneg %p76
        $region34: #{tpu_custom_call.1} parent=23 // pred_check_branch
          %218 = sbr.rel (%p216) target = $region36
        $region35: #{tpu_custom_call.1} parent=23 // pred_region
          %s220 = ssub.s32 512, 512
          %221 = vsyncadd %s212, %s220
          %s222 = smul.addr %s22, 4
          %s223 = smul.addr %s222, 128
          %s224 = scalar_lea.hbm %s1, %s223
          %s225 = sshll.u32 %s215, 4
          %s226 = int_to_ptr.vmem [resolvable:$true] %s225
          %231 = dma.vmem_to_hbm [thread:$0]  %s226, 512, %s224, %s212, 128, 128, 8
        $region36: #{tpu_custom_call.1} parent=23 // pred_fallthru
          _
      $region24: #{tpu_custom_call.1} parent=5 // pred_fallthru
        _
      %p232 = scmp.le.s32.totalorder 2, %s13
      // Predicated region
      $region37: #{tpu_custom_call.1} parent=5 // pred_check
        %p233 = pneg %p232
      $region38: #{tpu_custom_call.1} parent=5 // pred_check_branch
        %235 = sbr.rel (%p233) target = $region40
      $region39: #{tpu_custom_call.1} parent=5 // pred_region
        %s236 = ssub.s32 %s13, 2
        // Predicated region
        $region41: #{tpu_custom_call.1} parent=39 // pred_check
          %p237 = pneg %p82
        $region42: #{tpu_custom_call.1} parent=39 // pred_check_branch
          %239 = sbr.rel (%p237) target = $region44
        $region43: #{tpu_custom_call.1} parent=39 // pred_region
          %s240 = sand.u32 %s67, 1
          %s241 = scalar_lea.sflag [#allocation4], %s240
          %s242 = sand.u32 %s67, 1
          %s243 = smul.addr %s242, 32
          %s244 = scalar_lea.vmem [#allocation5], %s243
          %245 = dma.done %s241, 512
        $region44: #{tpu_custom_call.1} parent=39 // pred_fallthru
          _
      $region40: #{tpu_custom_call.1} parent=5 // pred_fallthru
        _
    $region6: #{tpu_custom_call.1} parent=1 // loop_footer
      %s17 = sadd.s32 1, %s13
    $region7: #{tpu_custom_call.1} parent=1 // loop_footer_branch
      %12 = sbr.rel target = $region3
    $region8: #{tpu_custom_call.1} parent=1 // loop_exit
      _
    %246 = vsyncpa [#allocation3], 1
    %s247 = scalar_lea.sflag [#allocation3], 1
    %248 = vsyncpa %s247, 1
    %249 = vsyncpa [#allocation4], 1
    %s250 = scalar_lea.sflag [#allocation4], 1
    %251 = vsyncpa %s250, 1

</llo_original>
